<compile_context>
chip_gen: v7x
topology: tpu7x:2x2x1
jax: 0.10.0
libtpu: 0.0.40
codegen_flags: <defaults>
</compile_context>

<pallas_src>
import functools

import jax
import jax.numpy as jnp
from jax import lax
from jax.experimental import pallas as pl
from jax.experimental.pallas import tpu as pltpu

_LANE = 128
_SUB = 8
_MAX_TILE_ROWS = 2048   # 2048x128 f32: x block 2 MiB + oy/by 1 MiB each


def _oor_loss_kernel(x_ref, oy_ref, by_ref, out_ref, *, rows, tile_rows):
    # x_ref: (1, 2, TR, 128); oy_ref/by_ref: (1, TR, 128); out_ref: (1,1,F,128)
    s = x_ref[0, 0].astype(jnp.float32)       # (TR, 128) sin branch
    c = x_ref[0, 1].astype(jnp.float32)       # (TR, 128) cos branch
    oy = oy_ref[0].astype(jnp.float32)        # (TR, 128)
    by = by_ref[0].astype(jnp.float32)        # (TR, 128)

    # rsqrt (EUP) + 2 muls instead of sqrt + 2 divides; clamp keeps
    # degenerate pixels finite (reference would produce inf/NaN there).
    inv = lax.rsqrt(jnp.maximum(s * s + c * c, jnp.float32(1e-12)))
    sin_x = s * inv
    cos_x = c * inv

    # Trig identity: (cos_x - cos y)^2 + (sin_x - sin y)^2
    #              = 2 - 2*(cos_x*cos y + sin_x*sin y)   (cos_x^2+sin_x^2 = 1)
    f = 2.0 - 2.0 * (cos_x * jnp.cos(oy) + sin_x * jnp.sin(oy))

    # f >= 0 (up to rounding), so abs() is redundant; branch selection matches.
    loss = jnp.where(f < 1.0, 0.5 * f * f, f - 0.5)
    w = loss * by                             # (TR, 128)

    # Mask the ragged tail tile (Pallas pads partial blocks with unspecified
    # data).  Static no-op when the grid tiles R exactly.
    if rows % tile_rows != 0:
        row_idx = (pl.program_id(1) * tile_rows
                   + lax.broadcasted_iota(jnp.int32, w.shape, 0))
        w = jnp.where(row_idx < rows, w, jnp.float32(0.0))

    if tile_rows % _SUB == 0:
        # Fold sublane groups with elementwise vreg adds (pure VPU, no XLU).
        contrib = w.reshape(tile_rows // _SUB, _SUB, _LANE).sum(axis=0)
    else:
        # Tiny-image path (tile_rows == rows < 8): emit rows directly.
        contrib = w
    out_ref[...] = contrib[None, None]


def oor_loss(ori_x, ori_y, b_y, reduction="mean"):
    """Pallas implementation of OORLoss.forward.

    ori_x: [N, 2, H, W]; ori_y, b_y: [N, H, W]. Returns a scalar.
    """
    N, C, H, W = ori_x.shape
    assert C == 2, "ori_x must have 2 channels (sin, cos)"
    HW = H * W
    n_elem = N * HW

    # Flatten spatial and view as (rows, 128).  Free bitcast when HW % 128 == 0.
    HWp = -(-HW // _LANE) * _LANE
    pad = HWp - HW
    x = ori_x.reshape(N, 2, HW)
    oy = ori_y.reshape(N, HW)
    by = b_y.reshape(N, HW)
    if pad:
        # TODO(synk): only taken when H*W is not lane-aligned; costs one extra
        # HBM pass.  Zero b_y in the pad region -> zero contribution.
        x = jnp.pad(x, ((0, 0), (0, 0), (0, pad)))
        oy = jnp.pad(oy, ((0, 0), (0, pad)))
        by = jnp.pad(by, ((0, 0), (0, pad)))

    R = HWp // _LANE
    x = x.reshape(N, 2, R, _LANE)
    oy = oy.reshape(N, R, _LANE)
    by = by.reshape(N, R, _LANE)

    # Fixed, shape-independent tile height (multiple of 8, <= R); ragged tail
    # handled by a partial block + in-kernel mask.
    if R >= _SUB:
        TR = min(_MAX_TILE_ROWS, (R // _SUB) * _SUB)
        fold_rows = _SUB
    else:
        TR = R                       # tiny image: single sub-8-row tile
        fold_rows = R
    T = -(-R // TR)

    kernel = functools.partial(_oor_loss_kernel, rows=R, tile_rows=TR)

    in_bytes = (2 * ori_x.dtype.itemsize + ori_y.dtype.itemsize
                + b_y.dtype.itemsize) * N * HWp
    out_bytes = 4 * N * T * fold_rows * _LANE
    cost = pl.CostEstimate(
        flops=14 * N * HWp,
        transcendentals=3 * N * HWp,        # rsqrt, sin, cos
        bytes_accessed=in_bytes + out_bytes,
    )

    partial = pl.pallas_call(
        kernel,
        out_shape=jax.ShapeDtypeStruct((N, T, fold_rows, _LANE), jnp.float32),
        grid=(N, T),
        in_specs=[
            pl.BlockSpec((1, 2, TR, _LANE), lambda n, t: (n, 0, t, 0)),
            pl.BlockSpec((1, TR, _LANE), lambda n, t: (n, t, 0)),
            pl.BlockSpec((1, TR, _LANE), lambda n, t: (n, t, 0)),
        ],
        out_specs=pl.BlockSpec((1, 1, fold_rows, _LANE),
                               lambda n, t: (n, t, 0, 0)),
        compiler_params=pltpu.CompilerParams(
            dimension_semantics=("parallel", "parallel"),
            vmem_limit_bytes=32 * 1024 * 1024,
        ),
        cost_estimate=cost,
    )(x, oy, by)

    total = jnp.sum(partial)
    if reduction == "mean":
        return total / jnp.float32(n_elem)
    return total / jnp.float32(N)


def _reference(ori_x, ori_y, b_y, reduction="mean"):
    ori_x_sin, ori_x_cos = ori_x[:, 0], ori_x[:, 1]
    den = jnp.sqrt(ori_x_sin ** 2 + ori_x_cos ** 2)
    sin_x = ori_x_sin / den
    cos_x = ori_x_cos / den
    ori_f = (cos_x - jnp.cos(ori_y)) ** 2 + (sin_x - jnp.sin(ori_y)) ** 2
    flags = jnp.abs(ori_f) < 1
    ori_loss = jnp.where(flags, 0.5 * ori_f ** 2, jnp.abs(ori_f) - 0.5)
    if reduction == "mean":
        return jnp.mean(ori_loss * b_y)
    return jnp.sum(ori_loss * b_y) / b_y.shape[0]


if __name__ == "__main__":
    key = jax.random.PRNGKey(0)

    # Case 1: small lane-aligned image (tiny-R path, single tile).
    k1, k2, k3, key = jax.random.split(key, 4)
    N, H, W = 2, 16, 16
    ori_x = jax.random.normal(k1, (N, 2, H, W), dtype=jnp.float32)
    ori_y = jax.random.uniform(k2, (N, H, W), minval=-3.14, maxval=3.14,
                               dtype=jnp.float32)
    b_y = (jax.random.uniform(k3, (N, H, W)) > 0.5).astype(jnp.float32)

    out_mean = jax.block_until_ready(oor_loss(ori_x, ori_y, b_y, "mean"))
    out_sum = jax.block_until_ready(oor_loss(ori_x, ori_y, b_y, "sum"))
    ref_mean = _reference(ori_x, ori_y, b_y, "mean")
    ref_sum = _reference(ori_x, ori_y, b_y, "sum")
    assert jnp.allclose(out_mean, ref_mean, rtol=1e-4, atol=1e-6), (out_mean, ref_mean)
    assert jnp.allclose(out_sum, ref_sum, rtol=1e-4, atol=1e-6), (out_sum, ref_sum)

    # Case 2: R = 9 rows (>= 8, not a multiple of 8) -> exercises the
    # cdiv grid + masked partial tail tile path.
    k1, k2, k3, key = jax.random.split(key, 4)
    N2, H2, W2 = 1, 32, 36   # H*W = 1152 = 9 * 128
    ori_x2 = jax.random.normal(k1, (N2, 2, H2, W2), dtype=jnp.float32)
    ori_y2 = jax.random.uniform(k2, (N2, H2, W2), minval=-3.14, maxval=3.14,
                                dtype=jnp.float32)
    b_y2 = (jax.random.uniform(k3, (N2, H2, W2)) > 0.5).astype(jnp.float32)

    out2 = jax.block_until_ready(oor_loss(ori_x2, ori_y2, b_y2, "mean"))
    ref2 = _reference(ori_x2, ori_y2, b_y2, "mean")
    assert jnp.allclose(out2, ref2, rtol=1e-4, atol=1e-6), (out2, ref2)

    print("KERNEL_OK")
</pallas_src>

<mosaic_0001>
module attributes {stable_mosaic.version = 11 : i64} {
  func.func @_oor_loss_kernel(%arg0: i32, %arg1: i32, %arg2: memref<1x2x2x128xf32, #tpu.memory_space<vmem>>, %arg3: memref<1x2x128xf32, #tpu.memory_space<vmem>>, %arg4: memref<1x2x128xf32, #tpu.memory_space<vmem>>, %arg5: memref<1x1x2x128xf32, #tpu.memory_space<vmem>>) attributes {dimension_semantics = [#tpu.dimension_semantics<parallel>, #tpu.dimension_semantics<parallel>], iteration_bounds = array<i64: 2, 1>, scalar_prefetch = 0 : i64, scratch_operands = 0 : i64, tpu.core_type = #tpu.core_type<tc>, window_params = [{transform_indices = @transform_0, window_bounds = array<i64: 1, 2, 2, 128>}, {transform_indices = @transform_1, window_bounds = array<i64: 1, 2, 128>}, {transform_indices = @transform_2, window_bounds = array<i64: 1, 2, 128>}, {transform_indices = @transform_3, window_bounds = array<i64: 1, 1, 2, 128>}]} {
    %c0 = arith.constant 0 : index
    %c0_0 = arith.constant 0 : index
    %c0_1 = arith.constant 0 : index
    %c0_2 = arith.constant 0 : index
    %0 = vector.load %arg2[%c0, %c0_0, %c0_1, %c0_2] : memref<1x2x2x128xf32, #tpu.memory_space<vmem>>, vector<1x1x2x128xf32>
    %1 = vector.shape_cast %0 : vector<1x1x2x128xf32> to vector<2x128xf32>
    %c0_3 = arith.constant 0 : index
    %c1 = arith.constant 1 : index
    %c0_4 = arith.constant 0 : index
    %c0_5 = arith.constant 0 : index
    %2 = vector.load %arg2[%c0_3, %c1, %c0_4, %c0_5] : memref<1x2x2x128xf32, #tpu.memory_space<vmem>>, vector<1x1x2x128xf32>
    %3 = vector.shape_cast %2 : vector<1x1x2x128xf32> to vector<2x128xf32>
    %c0_6 = arith.constant 0 : index
    %c0_7 = arith.constant 0 : index
    %c0_8 = arith.constant 0 : index
    %4 = vector.load %arg3[%c0_6, %c0_7, %c0_8] : memref<1x2x128xf32, #tpu.memory_space<vmem>>, vector<1x2x128xf32>
    %5 = vector.shape_cast %4 : vector<1x2x128xf32> to vector<2x128xf32>
    %c0_9 = arith.constant 0 : index
    %c0_10 = arith.constant 0 : index
    %c0_11 = arith.constant 0 : index
    %6 = vector.load %arg4[%c0_9, %c0_10, %c0_11] : memref<1x2x128xf32, #tpu.memory_space<vmem>>, vector<1x2x128xf32>
    %7 = vector.shape_cast %6 : vector<1x2x128xf32> to vector<2x128xf32>
    %8 = arith.mulf %1, %1 : vector<2x128xf32>
    %9 = arith.mulf %3, %3 : vector<2x128xf32>
    %10 = arith.addf %8, %9 : vector<2x128xf32>
    %cst = arith.constant 9.99999996E-13 : f32
    %11 = vector.broadcast %cst : f32 to vector<2x128xf32>
    %12 = arith.maximumf %10, %11 : vector<2x128xf32>
    %13 = math.rsqrt %12 : vector<2x128xf32>
    %14 = arith.mulf %1, %13 : vector<2x128xf32>
    %15 = arith.mulf %3, %13 : vector<2x128xf32>
    %16 = math.cos %5 : vector<2x128xf32>
    %17 = arith.mulf %15, %16 : vector<2x128xf32>
    %18 = math.sin %5 : vector<2x128xf32>
    %19 = arith.mulf %14, %18 : vector<2x128xf32>
    %20 = arith.addf %17, %19 : vector<2x128xf32>
    %cst_12 = arith.constant 2.000000e+00 : f32
    %21 = vector.broadcast %cst_12 : f32 to vector<2x128xf32>
    %22 = arith.mulf %21, %20 : vector<2x128xf32>
    %cst_13 = arith.constant 2.000000e+00 : f32
    %23 = vector.broadcast %cst_13 : f32 to vector<2x128xf32>
    %24 = arith.subf %23, %22 : vector<2x128xf32>
    %cst_14 = arith.constant 1.000000e+00 : f32
    %25 = vector.broadcast %cst_14 : f32 to vector<2x128xf32>
    %26 = arith.cmpf olt, %24, %25 : vector<2x128xf32>
    %cst_15 = arith.constant 5.000000e-01 : f32
    %27 = vector.broadcast %cst_15 : f32 to vector<2x128xf32>
    %28 = arith.mulf %27, %24 : vector<2x128xf32>
    %29 = arith.mulf %28, %24 : vector<2x128xf32>
    %cst_16 = arith.constant 5.000000e-01 : f32
    %30 = vector.broadcast %cst_16 : f32 to vector<2x128xf32>
    %31 = arith.subf %24, %30 : vector<2x128xf32>
    %32 = arith.select %26, %29, %31 : vector<2x128xi1>, vector<2x128xf32>
    %33 = arith.mulf %32, %7 : vector<2x128xf32>
    %34 = vector.shape_cast %33 : vector<2x128xf32> to vector<1x1x2x128xf32>
    %c0_17 = arith.constant 0 : index
    %c0_18 = arith.constant 0 : index
    %c0_19 = arith.constant 0 : index
    %c0_20 = arith.constant 0 : index
    %35 = vector.load %arg5[%c0_17, %c0_18, %c0_19, %c0_20] : memref<1x1x2x128xf32, #tpu.memory_space<vmem>>, vector<1x1x2x128xf32>
    tpu.vector_store %arg5[%c0_17, %c0_18, %c0_19, %c0_20], %34 {strides = array<i32>} : memref<1x1x2x128xf32, #tpu.memory_space<vmem>>, vector<1x1x2x128xf32>,
    return
  }
  func.func @transform_0(%arg0: i32, %arg1: i32) -> (i32, i32, i32, i32) {
    %c0_i32 = arith.constant 0 : i32
    %c0_i32_0 = arith.constant 0 : i32
    %c0_i32_1 = arith.constant 0 : i32
    return %arg0, %c0_i32, %arg1, %c0_i32_0 : i32, i32, i32, i32
  }
  func.func @transform_1(%arg0: i32, %arg1: i32) -> (i32, i32, i32) {
    %c0_i32 = arith.constant 0 : i32
    %c0_i32_0 = arith.constant 0 : i32
    return %arg0, %arg1, %c0_i32 : i32, i32, i32
  }
  func.func @transform_2(%arg0: i32, %arg1: i32) -> (i32, i32, i32) {
    %c0_i32 = arith.constant 0 : i32
    %c0_i32_0 = arith.constant 0 : i32
    return %arg0, %arg1, %c0_i32 : i32, i32, i32
  }
  func.func @transform_3(%arg0: i32, %arg1: i32) -> (i32, i32, i32, i32) {
    %c0_i32 = arith.constant 0 : i32
    %c0_i32_0 = arith.constant 0 : i32
    %c0_i32_1 = arith.constant 0 : i32
    return %arg0, %arg1, %c0_i32, %c0_i32_0 : i32, i32, i32, i32
  }
}

</mosaic_0001>

<llo_original>
// kernel: tpu_custom_call.1
$region0: #{tpu_custom_call.1}
  #allocation0 [shape = 'u32[]', space=smem, size = 0x4, offset = 0x4, fixed_abs, tag = 'smem constant byte address 0x4 - core index']
  #allocation1 [shape = 'u32[144,128]{1,0:T(1,128)}', space=vmem, size = 0x12000, scoped, tag = 'internal scratch']
  %s0 = inlined_call_operand.hbm [shape: f32[2,2,2,128], index: 0, kind: input, shape index: {}]
  %s1 = inlined_call_operand.hbm [shape: f32[2,2,128], index: 1, kind: input, shape index: {}]
  %s2 = inlined_call_operand.vmem [shape: f32[2,2,128], index: 2, kind: input, shape index: {}]
  %s3 = inlined_call_operand.hbm [shape: f32[2,1,2,128], index: 3, kind: output, shape index: {}]
  %s4 = sld [smem:[#allocation0]]
  $region53: #{tpu_custom_call.1} parent=0
    _
  %s6 = ssub.s32 1, %s4
  %s7 = scalar_select 0, %s6, %s4
  $region1: #{tpu_custom_call.1} parent=0
    #allocation2 [shape = 'u8[4096]{0}', space=vmem, size = 0x1000, scoped, tag = 'input window, operand 0']
    #allocation3 [shape = 's32[2]{0}', space=sflag, size = 0x8, scoped, tag = 'scoped memory for tpu_custom_call.1']
    #allocation4 [shape = 's32[2]{0}', space=sflag, size = 0x8, scoped, tag = 'scoped memory for tpu_custom_call.1']
    #allocation5 [shape = 'u8[2048]{0}', space=vmem, size = 0x800, scoped, tag = 'input window, operand 1']
    #allocation6 [shape = 's32[2]{0}', space=sflag, size = 0x8, scoped, tag = 'scoped memory for tpu_custom_call.1']
    #allocation7 [shape = 'u8[2048]{0}', space=vmem, size = 0x800, scoped, tag = 'output window, operand 0']
    %8 = vsyncpa [#allocation3], 0
    %s9 = scalar_lea.sflag [#allocation3], 1
    %10 = vsyncpa %s9, 0
    %11 = vsyncpa [#allocation6], 0
    %s12 = scalar_lea.sflag [#allocation6], 1
    %13 = vsyncpa %s12, 0
    %14 = vsyncpa [#allocation4], 0
    %s15 = scalar_lea.sflag [#allocation4], 1
    %16 = vsyncpa %s15, 0
    loop: start=0, step=1, limit=4
    $region2: #{tpu_custom_call.1} parent=1 // loop_pre_header
      _
    $region3: #{tpu_custom_call.1} parent=1 // loop_header
      %s18 = sphi 0, %s22
      %p19 = scmp.ge.s32.totalorder %s18, 4
      %s25 = sphi 0, %s37
      %s26 = sphi 0, %s33
      %s27 = sphi 0, %s25
      %s28 = sphi 0, %s26
      %s29 = sphi 0, %s27
      %s30 = sphi 0, %s28
      %s42 = sphi 0, %s44
      %s45 = sphi 0, %s42
      %s46 = sphi 0, %s45
      %s62 = sphi 0, %s46
      %s70 = sphi 0, %s72
      %s73 = sphi 0, %s70
      %s74 = sphi 0, %s73
      %s90 = sphi 0, %s74
      %s98 = sphi 0, %s100
      %s101 = sphi 0, %s98
      %s102 = sphi 0, %s101
      %s118 = sphi 0, %s102
      %s126 = sphi 0, %s128
      %s129 = sphi 0, %s126
      %s130 = sphi 0, %s129
      %s146 = sphi 0, %s130
    $region4: #{tpu_custom_call.1} parent=1 // loop_header_branch
      %21 = sbr.rel (%p19) target = $region8
    $region5: #{tpu_custom_call.1} parent=1 // loop_body
      %s23 = ssub.s32 %s18, 1
      %s24 = ssub.s32 %s18, 2
      %s31 = sadd.s32 1, %s26
      %p32 = scmp.ge.s32.totalorder %s31, 1
      %s33 = scalar_select %p32, 0, %s31
      %s34 = sadd.s32 1, %s25
      %s35 = scalar_select %p32, %s34, %s25
      %p36 = scmp.ge.s32.totalorder %s35, 2
      %s37 = scalar_select %p36, 0, %s35
      %s38 = ssub.s32 %s25, %s37
      %s39 = ssub.s32 %s26, %s33
      %s40 = sor.u32 %s38, %s39
      %p41 = scmp.eq.s32.totalorder %s40, 0
      %s43 = sadd.s32 %s42, 1
      %s44 = scalar_select %p41, %s42, %s43
      %p47 = pneg %p41
      %p48 = scmp.eq.s32.totalorder %s18, 1
      %p49 = por %p47, %p48
      %p50 = scmp.ne.s32.totalorder %s42, %s45
      %p51 = scmp.eq.s32.totalorder %s18, 0
      %p52 = por %p50, %p51
      %p53 = scmp.ne.s32.totalorder %s42, %s45
      %p54 = scmp.eq.s32.totalorder %s23, 1
      %p55 = por %p53, %p54
      %p56 = scmp.ne.s32.totalorder %s45, %s46
      %p57 = scmp.eq.s32.totalorder %s23, 0
      %p58 = por %p56, %p57
      %p59 = scmp.ne.s32.totalorder %s45, %s46
      %p60 = scmp.eq.s32.totalorder %s24, 1
      %p61 = por %p59, %p60
      %p63 = scmp.ne.s32.totalorder %s46, %s62
      %p64 = scmp.eq.s32.totalorder %s24, 0
      %p65 = por %p63, %p64
      %s66 = ssub.s32 %s25, %s37
      %s67 = ssub.s32 %s26, %s33
      %s68 = sor.u32 %s66, %s67
      %p69 = scmp.eq.s32.totalorder %s68, 0
      %s71 = sadd.s32 %s70, 1
      %s72 = scalar_select %p69, %s70, %s71
      %p75 = pneg %p69
      %p76 = scmp.eq.s32.totalorder %s18, 1
      %p77 = por %p75, %p76
      %p78 = scmp.ne.s32.totalorder %s70, %s73
      %p79 = scmp.eq.s32.totalorder %s18, 0
      %p80 = por %p78, %p79
      %p81 = scmp.ne.s32.totalorder %s70, %s73
      %p82 = scmp.eq.s32.totalorder %s23, 1
      %p83 = por %p81, %p82
      %p84 = scmp.ne.s32.totalorder %s73, %s74
      %p85 = scmp.eq.s32.totalorder %s23, 0
      %p86 = por %p84, %p85
      %p87 = scmp.ne.s32.totalorder %s73, %s74
      %p88 = scmp.eq.s32.totalorder %s24, 1
      %p89 = por %p87, %p88
      %p91 = scmp.ne.s32.totalorder %s74, %s90
      %p92 = scmp.eq.s32.totalorder %s24, 0
      %p93 = por %p91, %p92
      %s94 = ssub.s32 %s25, %s37
      %s95 = ssub.s32 %s26, %s33
      %s96 = sor.u32 %s94, %s95
      %p97 = scmp.eq.s32.totalorder %s96, 0
      %s99 = sadd.s32 %s98, 1
      %s100 = scalar_select %p97, %s98, %s99
      %p103 = pneg %p97
      %p104 = scmp.eq.s32.totalorder %s18, 1
      %p105 = por %p103, %p104
      %p106 = scmp.ne.s32.totalorder %s98, %s101
      %p107 = scmp.eq.s32.totalorder %s18, 0
      %p108 = por %p106, %p107
      %p109 = scmp.ne.s32.totalorder %s98, %s101
      %p110 = scmp.eq.s32.totalorder %s23, 1
      %p111 = por %p109, %p110
      %p112 = scmp.ne.s32.totalorder %s101, %s102
      %p113 = scmp.eq.s32.totalorder %s23, 0
      %p114 = por %p112, %p113
      %p115 = scmp.ne.s32.totalorder %s101, %s102
      %p116 = scmp.eq.s32.totalorder %s24, 1
      %p117 = por %p115, %p116
      %p119 = scmp.ne.s32.totalorder %s102, %s118
      %p120 = scmp.eq.s32.totalorder %s24, 0
      %p121 = por %p119, %p120
      %s122 = ssub.s32 %s25, %s37
      %s123 = ssub.s32 %s26, %s33
      %s124 = sor.u32 %s122, %s123
      %p125 = scmp.eq.s32.totalorder %s124, 0
      %s127 = sadd.s32 %s126, 1
      %s128 = scalar_select %p125, %s126, %s127
      %p131 = pneg %p125
      %p132 = scmp.eq.s32.totalorder %s18, 1
      %p133 = por %p131, %p132
      %p134 = scmp.ne.s32.totalorder %s126, %s129
      %p135 = scmp.eq.s32.totalorder %s18, 0
      %p136 = por %p134, %p135
      %p137 = scmp.ne.s32.totalorder %s126, %s129
      %p138 = scmp.eq.s32.totalorder %s23, 1
      %p139 = por %p137, %p138
      %p140 = scmp.ne.s32.totalorder %s129, %s130
      %p141 = scmp.eq.s32.totalorder %s23, 0
      %p142 = por %p140, %p141
      %p143 = scmp.ne.s32.totalorder %s129, %s130
      %p144 = scmp.eq.s32.totalorder %s24, 1
      %p145 = por %p143, %p144
      %p147 = scmp.ne.s32.totalorder %s130, %s146
      %p148 = scmp.eq.s32.totalorder %s24, 0
      %p149 = por %p147, %p148
      %p150 = scmp.le.s32.totalorder 1, %s18
      %p151 = scmp.lt.s32.totalorder %s18, 3
      %p152 = pnand %p150, %p151
      %p153 = pneg %p152
      // Predicated region
      $region9: #{tpu_custom_call.1} parent=5 // pred_check
        _
      $region10: #{tpu_custom_call.1} parent=5 // pred_check_branch
        %155 = sbr.rel (%p152) target = $region12
      $region11: #{tpu_custom_call.1} parent=5 // pred_region
        %s156 = ssub.s32 %s18, 1
      $region12: #{tpu_custom_call.1} parent=5 // pred_fallthru
        _
      %p157 = scmp.lt.s32.totalorder %s18, 2
      // Predicated region
      $region13: #{tpu_custom_call.1} parent=5 // pred_check
        %p158 = pneg %p157
      $region14: #{tpu_custom_call.1} parent=5 // pred_check_branch
        %160 = sbr.rel (%p158) target = $region16
      $region15: #{tpu_custom_call.1} parent=5 // pred_region
        // Predicated region
        $region17: #{tpu_custom_call.1} parent=15 // pred_check
          %p161 = pneg %p52
        $region18: #{tpu_custom_call.1} parent=15 // pred_check_branch
          %163 = sbr.rel (%p161) target = $region20
        $region19: #{tpu_custom_call.1} parent=15 // pred_region
          %s164 = sand.u32 %s42, 1
          %s165 = scalar_lea.sflag [#allocation3], %s164
          %s166 = sand.u32 %s42, 1
          %s167 = smul.addr %s166, 4
          %s168 = scalar_lea.vmem [#allocation2], %s167
          %s170 = ssub.s32 64, 64
          %171 = vsyncadd %s165, %s170
          %s172 = smul.addr %s25, 2
          %s173 = sadd.s32 %s26, %s172
          %s174 = smul.addr %s173, 32
          %s175 = scalar_lea.hbm %s0, %s174
          %s176 = sshll.u32 %s168, 4
          %s177 = int_to_ptr.vmem [resolvable:$true] %s176
          %182 = dma.hbm_to_vmem [thread:$0]  %s175, 64, %s177, %s165, 32, 32, 2
        $region20: #{tpu_custom_call.1} parent=15 // pred_fallthru
          _
        // Predicated region
        $region21: #{tpu_custom_call.1} parent=15 // pred_check
          %p183 = pneg %p80
        $region22: #{tpu_custom_call.1} parent=15 // pred_check_branch
          %185 = sbr.rel (%p183) target = $region24
        $region23: #{tpu_custom_call.1} parent=15 // pred_region
          %s186 = sand.u32 %s70, 1
          %s187 = scalar_lea.sflag [#allocation6], %s186
          %s188 = sand.u32 %s70, 1
          %s189 = smul.addr %s188, 2
          %s190 = scalar_lea.vmem [#allocation5], %s189
          %s192 = ssub.s32 32, 32
          %193 = vsyncadd %s187, %s192
          %s194 = sadd.s32 %s26, %s25
          %s195 = smul.addr %s194, 32
          %s196 = scalar_lea.hbm %s1, %s195
          %s198 = sshll.u32 %s190, 4
          %s199 = int_to_ptr.vmem [resolvable:$true] %s198
          %201 = dma.hbm_to_vmem [thread:$0]  %s196, 32, %s199, %s187
        $region24: #{tpu_custom_call.1} parent=15 // pred_fallthru
          _
        // Predicated region
        $region25: #{tpu_custom_call.1} parent=15 // pred_check
          %p202 = pneg %p108
        $region26: #{tpu_custom_call.1} parent=15 // pred_check_branch
          %204 = sbr.rel (%p202) target = $region28
        $region27: #{tpu_custom_call.1} parent=15 // pred_region
          %p205 = scmp.lt.s32.totalorder %s25, 1
          %s206 = scalar_select %p205, %s25, 1
          %p207 = scmp.lt.s32.totalorder %s26, 0
          %s208 = scalar_select %p207, %s26, 0
          %s209 = sadd.s32 %s208, %s206
          %s210 = smul.addr %s209, 2
          %s211 = scalar_lea.vmem %s2, %s210
        $region28: #{tpu_custom_call.1} parent=15 // pred_fallthru
          _
      $region16: #{tpu_custom_call.1} parent=5 // pred_fallthru
        _
      %p212 = scmp.le.s32.totalorder 1, %s18
      %p213 = scmp.lt.s32.totalorder %s18, 3
      %p214 = pnand %p212, %p213
      %p215 = pneg %p214
      // Predicated region
      $region29: #{tpu_custom_call.1} parent=5 // pred_check
        _
      $region30: #{tpu_custom_call.1} parent=5 // pred_check_branch
        %217 = sbr.rel (%p214) target = $region32
      $region31: #{tpu_custom_call.1} parent=5 // pred_region
        %s218 = ssub.s32 %s18, 1
        %s219 = sand.u32 %s45, 1
        %s220 = scalar_lea.sflag [#allocation3], %s219
        %s221 = sand.u32 %s45, 1
        %s222 = smul.addr %s221, 4
        %s223 = scalar_lea.vmem [#allocation2], %s222
        // Predicated region
        $region33: #{tpu_custom_call.1} parent=31 // pred_check
          %p224 = pneg %p58
        $region34: #{tpu_custom_call.1} parent=31 // pred_check_branch
          %226 = sbr.rel (%p224) target = $region36
        $region35: #{tpu_custom_call.1} parent=31 // pred_region
          %227 = dma.done %s220, 64
        $region36: #{tpu_custom_call.1} parent=31 // pred_fallthru
          _
        %s228 = sand.u32 %s73, 1
        %s229 = scalar_lea.sflag [#allocation6], %s228
        %s230 = sand.u32 %s73, 1
        %s231 = smul.addr %s230, 2
        %s232 = scalar_lea.vmem [#allocation5], %s231
        // Predicated region
        $region37: #{tpu_custom_call.1} parent=31 // pred_check
          %p233 = pneg %p86
        $region38: #{tpu_custom_call.1} parent=31 // pred_check_branch
          %235 = sbr.rel (%p233) target = $region40
        $region39: #{tpu_custom_call.1} parent=31 // pred_region
          %236 = dma.done %s229, 32
        $region40: #{tpu_custom_call.1} parent=31 // pred_fallthru
          _
        %s237 = sand.u32 %s45, 1
        %s238 = scalar_lea.sflag [#allocation3], %s237
        %s239 = sand.u32 %s45, 1
        %s240 = smul.addr %s239, 4
        %s241 = scalar_lea.vmem [#allocation2], %s240
        %p242 = pneg %p58
        %p243 = pneg %p55
        %s244 = sand.u32 %s73, 1
        %s245 = scalar_lea.sflag [#allocation6], %s244
        %s246 = sand.u32 %s73, 1
        %s247 = smul.addr %s246, 2
        %s248 = scalar_lea.vmem [#allocation5], %s247
        %p249 = pneg %p86
        %p250 = pneg %p83
        %p251 = scmp.lt.s32.totalorder %s27, 1
        %s252 = scalar_select %p251, %s27, 1
        %p253 = scmp.lt.s32.totalorder %s28, 0
        %s254 = scalar_select %p253, %s28, 0
        %s255 = sadd.s32 %s254, %s252
        %s256 = smul.addr %s255, 2
        %s257 = scalar_lea.vmem %s2, %s256
        %p258 = pneg %p114
        %p259 = pneg %p111
        %p260 = pneg %p142
        %p261 = pneg %p139
        %s262 = sand.u32 %s129, 1
        %s263 = scalar_lea.sflag [#allocation4], %s262
        %s264 = sand.u32 %s129, 1
        %s265 = smul.addr %s264, 2
        %s266 = scalar_lea.vmem [#allocation7], %s265
        %p267 = scmp.lt.s32.totalorder %s27, 1
        %s268 = scalar_select %p267, %s27, 1
        %p269 = scmp.lt.s32.totalorder %s28, 0
        %s270 = scalar_select %p269, %s28, 0
        %s271 = sadd.s32 %s270, %s268
        %s272 = smul.addr %s271, 2
        %s273 = scalar_lea.vmem %s2, %s272
        %v274 = vld [vmem:[%s223] sm:$0x3]
        %s275 = scalar_lea.vmem %s223, 2 [#allocation2]
        %v276 = vld [vmem:[%s275] sm:$0x3]
        %v277 = vld [vmem:[%s232] sm:$0x3]
        %v278 = vld [vmem:[%s273] sm:$0x3]
        %v279 = vmul.f32 %v274, %v274
        %v280 = vmul.f32 %v276, %v276
        %v281 = vadd.f32 %v279, %v280
        %v282 = vmax.f32 %v281, 1e-12
        %v283 = vrsqrt.pop %v282
        %v284 = vmul.f32 %v274, %v283
        %v285 = vmul.f32 %v276, %v283
        %v286 = vand.u32 2147483647, %v277
        %vm287 = vcmp.le.f32.partialorder %v286, 0.7853982
        %vm288 = vcmp.lt.s32.totalorder %v277, 0
        %v289 = vand.u32 %v277, 2139095040
        %v290 = vshrl.u32 %v289, 23
        %v291 = vsub.s32 %v290, 127
        %v292 = vand.u32 2147483647, %v277
        %v293 = vand.u32 %v292, 8388607
        %v294 = vor.u32 %v293, 8388608
        %v295 = vsub.s32 0, %v294
        %v296 = vadd.s32 %v291, 1
        %vm297 = vcmp.gt.s32.totalorder %v296, 0
        %v298 = vsel %vm297, %v296, 0
        %v299 = vshrl.u32 %v298, 5
        %v300 = vand.u32 %v298, 31
        %v301 = vsub.s32 32, %v300
        %v302 = vshrl.u32 683565275, %v301
        %v303 = vshll.u32 683565275, %v300
        %v304 = vshrl.u32 2475754826, %v301
        %v305 = vor.u32 %v303, %v304
        %v306 = vshll.u32 2475754826, %v300
        %v307 = vshrl.u32 2131351028, %v301
        %v308 = vor.u32 %v306, %v307
        %v309 = vshll.u32 2131351028, %v300
        %v310 = vshrl.u32 2102212464, %v301
        %v311 = vor.u32 %v309, %v310
        %v312 = vshll.u32 2102212464, %v300
        %v313 = vshrl.u32 920167782, %v301
        %v314 = vor.u32 %v312, %v313
        %v315 = vshll.u32 920167782, %v300
        %v316 = vshrl.u32 1326507024, %v301
        %v317 = vor.u32 %v315, %v316
        %vm318 = vcmp.lt.s32.totalorder %v299, 1
        %vm319 = vcmp.lt.s32.totalorder %v299, 2
        %vm320 = vcmp.lt.s32.totalorder %v299, 3
        %vm321 = vcmp.lt.s32.totalorder %v299, 4
        %v322 = vsel %vm318, %v302, %v305
        %v323 = vsel %vm321, %v311, 2102212464
        %v324 = vsel %vm320, %v308, %v323
        %v325 = vsel %vm319, %v322, %v324
        %v326 = vsel %vm318, %v305, %v308
        %v327 = vsel %vm321, %v314, 920167782
        %v328 = vsel %vm320, %v311, %v327
        %v329 = vsel %vm319, %v326, %v328
        %v330 = vsel %vm318, %v308, %v311
        %v331 = vsel %vm321, %v317, 1326507024
        %v332 = vsel %vm320, %v314, %v331
        %v333 = vsel %vm319, %v330, %v332
        %v334 = vshll.u32 %v294, 8
        %v335 = vmul.u32.u64.compose %v334, %v333
        %v336 = vextract.low.u32 %v335
        %v337 = vextract.high.u32 %v335
        %v338 = vmul.u32.u64.compose %v334, %v329
        %v339 = vextract.low.u32 %v338
        %v340 = vextract.high.u32 %v338
        %v341 = vmul.u32 %v334, %v325
        %v342 = vadd.s32 %v337, %v339
        %vm343 = vc.u32 %v337, %v339
        %v344 = vadd.s32 %v340, 1
        %v345 = vsel %vm343, %v344, %v340
        %v346 = vadd.s32 %v341, %v345
        %v347 = vadd.s32 %v346, 536870912
        %v348 = vshrl.u32 %v347, 30
        %v349 = vshll.u32 %v348, 30
        %v350 = vsub.s32 %v346, %v349
        %vm351 = vcmp.lt.s32.totalorder %v350, 0
        %v352 = vsub.s32 0, %v350
        %v353 = vsel %vm351, %v352, %v350
        %v354 = vclz %v353
        %v355 = vsub.s32 %v354, 2
        %vm356 = vcmp.gt.s32.totalorder 0, %v355
        %v357 = vsel %vm356, 0, %v355
        %v358 = vsub.s32 32, %v357
        %v359 = vshll.u32 %v350, %v357
        %v360 = vshrl.u32 %v342, %v358
        %v361 = vor.u32 %v359, %v360
        %v362 = vsub.s32 4294967266, %v357
        %v363 = vadd.s32 %v362, 127
        %v364 = vshll.u32 %v363, 23
        %v365 = vor.u32 4788187, %v364
        %v366 = vand.u32 2147483647, %v365
        %v368 = vcvt.s32.f32 %v361
        %v369 = vmul.f32 %v368, %v366
        %v370 = vxor.u32 %v369, 2147483648
        %v371 = vsel %vm288, %v370, %v369
        %v372 = vsub.s32 4, %v348
        %v373 = vsel %vm288, %v372, %v348
        %v374 = vsel %vm287, %v277, %v371
        %v375 = vsel %vm287, 0, %v373
        %v376 = vcosq.f32.pop %v374
        %v377 = vsinq.f32.pop %v374
        %vm378 = vweird.f32 %v277
        %v379 = vand.u32 %v375, 3
        %vm380 = vcmp.lt.s32.totalorder %v379, 2
        %vm381 = vcmp.eq.s32.totalorder %v379, 0
        %v382 = vxor.u32 %v377, 2147483648
        %v383 = vsel %vm381, %v376, %v382
        %vm384 = vcmp.eq.s32.totalorder %v379, 2
        %v385 = vxor.u32 %v376, 2147483648
        %v386 = vsel %vm384, %v385, %v377
        %v387 = vsel %vm380, %v383, %v386
        %v388 = vsel %vm378, nan, %v387
        %v389 = vmul.f32 %v285, %v388
        %v390 = vand.u32 2147483647, %v277
        %vm391 = vcmp.le.f32.partialorder %v390, 0.7853982
        %vm392 = vcmp.lt.s32.totalorder %v277, 0
        %v393 = vand.u32 %v277, 2139095040
        %v394 = vshrl.u32 %v393, 23
        %v395 = vsub.s32 %v394, 127
        %v396 = vand.u32 2147483647, %v277
        %v397 = vand.u32 %v396, 8388607
        %v398 = vor.u32 %v397, 8388608
        %v399 = vsub.s32 0, %v398
        %v400 = vadd.s32 %v395, 1
        %vm401 = vcmp.gt.s32.totalorder %v400, 0
        %v402 = vsel %vm401, %v400, 0
        %v403 = vshrl.u32 %v402, 5
        %v404 = vand.u32 %v402, 31
        %v405 = vsub.s32 32, %v404
        %v406 = vshrl.u32 683565275, %v405
        %v407 = vshll.u32 683565275, %v404
        %v408 = vshrl.u32 2475754826, %v405
        %v409 = vor.u32 %v407, %v408
        %v410 = vshll.u32 2475754826, %v404
        %v411 = vshrl.u32 2131351028, %v405
        %v412 = vor.u32 %v410, %v411
        %v413 = vshll.u32 2131351028, %v404
        %v414 = vshrl.u32 2102212464, %v405
        %v415 = vor.u32 %v413, %v414
        %v416 = vshll.u32 2102212464, %v404
        %v417 = vshrl.u32 920167782, %v405
        %v418 = vor.u32 %v416, %v417
        %v419 = vshll.u32 920167782, %v404
        %v420 = vshrl.u32 1326507024, %v405
        %v421 = vor.u32 %v419, %v420
        %vm422 = vcmp.lt.s32.totalorder %v403, 1
        %vm423 = vcmp.lt.s32.totalorder %v403, 2
        %vm424 = vcmp.lt.s32.totalorder %v403, 3
        %vm425 = vcmp.lt.s32.totalorder %v403, 4
        %v426 = vsel %vm422, %v406, %v409
        %v427 = vsel %vm425, %v415, 2102212464
        %v428 = vsel %vm424, %v412, %v427
        %v429 = vsel %vm423, %v426, %v428
        %v430 = vsel %vm422, %v409, %v412
        %v431 = vsel %vm425, %v418, 920167782
        %v432 = vsel %vm424, %v415, %v431
        %v433 = vsel %vm423, %v430, %v432
        %v434 = vsel %vm422, %v412, %v415
        %v435 = vsel %vm425, %v421, 1326507024
        %v436 = vsel %vm424, %v418, %v435
        %v437 = vsel %vm423, %v434, %v436
        %v438 = vshll.u32 %v398, 8
        %v439 = vmul.u32.u64.compose %v438, %v437
        %v440 = vextract.low.u32 %v439
        %v441 = vextract.high.u32 %v439
        %v442 = vmul.u32.u64.compose %v438, %v433
        %v443 = vextract.low.u32 %v442
        %v444 = vextract.high.u32 %v442
        %v445 = vmul.u32 %v438, %v429
        %v446 = vadd.s32 %v441, %v443
        %vm447 = vc.u32 %v441, %v443
        %v448 = vadd.s32 %v444, 1
        %v449 = vsel %vm447, %v448, %v444
        %v450 = vadd.s32 %v445, %v449
        %v451 = vadd.s32 %v450, 536870912
        %v452 = vshrl.u32 %v451, 30
        %v453 = vshll.u32 %v452, 30
        %v454 = vsub.s32 %v450, %v453
        %vm455 = vcmp.lt.s32.totalorder %v454, 0
        %v456 = vsub.s32 0, %v454
        %v457 = vsel %vm455, %v456, %v454
        %v458 = vclz %v457
        %v459 = vsub.s32 %v458, 2
        %vm460 = vcmp.gt.s32.totalorder 0, %v459
        %v461 = vsel %vm460, 0, %v459
        %v462 = vsub.s32 32, %v461
        %v463 = vshll.u32 %v454, %v461
        %v464 = vshrl.u32 %v446, %v462
        %v465 = vor.u32 %v463, %v464
        %v466 = vsub.s32 4294967266, %v461
        %v467 = vadd.s32 %v466, 127
        %v468 = vshll.u32 %v467, 23
        %v469 = vor.u32 4788187, %v468
        %v470 = vand.u32 2147483647, %v469
        %v472 = vcvt.s32.f32 %v465
        %v473 = vmul.f32 %v472, %v470
        %v474 = vxor.u32 %v473, 2147483648
        %v475 = vsel %vm392, %v474, %v473
        %v476 = vsub.s32 4, %v452
        %v477 = vsel %vm392, %v476, %v452
        %v478 = vsel %vm391, %v277, %v475
        %v479 = vsel %vm391, 0, %v477
        %v480 = vcosq.f32.pop %v478
        %v481 = vsinq.f32.pop %v478
        %vm482 = vweird.f32 %v277
        %v483 = vadd.s32 %v479, 3
        %v484 = vand.u32 %v483, 3
        %vm485 = vcmp.lt.s32.totalorder %v484, 2
        %vm486 = vcmp.eq.s32.totalorder %v484, 0
        %v487 = vxor.u32 %v481, 2147483648
        %v488 = vsel %vm486, %v480, %v487
        %vm489 = vcmp.eq.s32.totalorder %v484, 2
        %v490 = vxor.u32 %v480, 2147483648
        %v491 = vsel %vm489, %v490, %v481
        %v492 = vsel %vm485, %v488, %v491
        %v493 = vsel %vm482, nan, %v492
        %v494 = vmul.f32 %v284, %v493
        %v495 = vadd.f32 %v389, %v494
        %v496 = vmul.f32 %v495, 2.0
        %v497 = vsub.f32 2.0, %v496
        %vm498 = vcmp.lt.f32.partialorder %v497, 1.0
        %v499 = vmul.f32 %v497, 0.5
        %v500 = vmul.f32 %v499, %v497
        %v501 = vsub.f32 %v497, 0.5
        %v502 = vsel %vm498, %v500, %v501
        %v503 = vmul.f32 %v502, %v278
        %504 = vst [vmem:[%s266] sm:$0x3] %v503
        %s505 = sand.u32 %s129, 1
        %s506 = scalar_lea.sflag [#allocation4], %s505
        %s507 = sand.u32 %s129, 1
        %s508 = smul.addr %s507, 2
        %s509 = scalar_lea.vmem [#allocation7], %s508
        // Predicated region
        $region41: #{tpu_custom_call.1} parent=31 // pred_check
          %p510 = pneg %p139
        $region42: #{tpu_custom_call.1} parent=31 // pred_check_branch
          %512 = sbr.rel (%p510) target = $region44
        $region43: #{tpu_custom_call.1} parent=31 // pred_region
          %s514 = ssub.s32 32, 32
          %515 = vsyncadd %s506, %s514
          %s516 = sadd.s32 %s28, %s27
          %s517 = smul.addr %s516, 32
          %s518 = scalar_lea.hbm %s3, %s517
          %s520 = sshll.u32 %s509, 4
          %s521 = int_to_ptr.vmem [resolvable:$true] %s520
          %523 = dma.vmem_to_hbm [thread:$0]  %s521, 32, %s518, %s506
        $region44: #{tpu_custom_call.1} parent=31 // pred_fallthru
          _
      $region32: #{tpu_custom_call.1} parent=5 // pred_fallthru
        _
      %p524 = scmp.le.s32.totalorder 2, %s18
      // Predicated region
      $region45: #{tpu_custom_call.1} parent=5 // pred_check
        %p525 = pneg %p524
      $region46: #{tpu_custom_call.1} parent=5 // pred_check_branch
        %527 = sbr.rel (%p525) target = $region48
      $region47: #{tpu_custom_call.1} parent=5 // pred_region
        %s528 = ssub.s32 %s18, 2
        // Predicated region
        $region49: #{tpu_custom_call.1} parent=47 // pred_check
          %p529 = pneg %p145
        $region50: #{tpu_custom_call.1} parent=47 // pred_check_branch
          %531 = sbr.rel (%p529) target = $region52
        $region51: #{tpu_custom_call.1} parent=47 // pred_region
          %s532 = sand.u32 %s130, 1
          %s533 = scalar_lea.sflag [#allocation4], %s532
          %s534 = sand.u32 %s130, 1
          %s535 = smul.addr %s534, 2
          %s536 = scalar_lea.vmem [#allocation7], %s535
          %537 = dma.done %s533, 32
        $region52: #{tpu_custom_call.1} parent=47 // pred_fallthru
          _
      $region48: #{tpu_custom_call.1} parent=5 // pred_fallthru
        _
    $region6: #{tpu_custom_call.1} parent=1 // loop_footer
      %s22 = sadd.s32 1, %s18
    $region7: #{tpu_custom_call.1} parent=1 // loop_footer_branch
      %17 = sbr.rel target = $region3
    $region8: #{tpu_custom_call.1} parent=1 // loop_exit
      _
    %538 = vsyncpa [#allocation3], 1
    %s539 = scalar_lea.sflag [#allocation3], 1
    %540 = vsyncpa %s539, 1
    %541 = vsyncpa [#allocation6], 1
    %s542 = scalar_lea.sflag [#allocation6], 1
    %543 = vsyncpa %s542, 1
    %544 = vsyncpa [#allocation4], 1
    %s545 = scalar_lea.sflag [#allocation4], 1
    %546 = vsyncpa %s545, 1

</llo_original>
